<compile_context>
chip_gen: v5e
topology: v5e:2x2
jax: 0.10.0
libtpu: 0.0.40
codegen_flags: <defaults>
</compile_context>

<pallas_src>
import functools

import jax
import jax.numpy as jnp
from jax.experimental import pallas as pl
from jax.experimental.pallas import tpu as pltpu


def _round_up(x, m):
    return ((x + m - 1) // m) * m


def _mxu_lane_align():
    """256 on the 256-wide MXU chips (v6e/v7x), 128 on v5e / unknown."""
    try:
        kind = jax.devices()[0].device_kind.lower()
    except Exception:
        return 128
    if "v6" in kind or "v7" in kind:
        return 256
    return 128


def _pad_dim(n, align_pref):
    p128 = _round_up(n, 128)
    if align_pref >= 256 and n >= 192:
        p256 = _round_up(n, 256)
        if p256 - n <= max(64, n // 4):   # only pad to 256 when overhead is small
            return p256
    return p128


def _vmem_budget_bytes():
    cap = 64 * 1024 * 1024
    try:
        cap = int(pltpu.get_tpu_info().vmem_capacity_bytes)
    except Exception:
        pass
    return int(cap * 0.85)   # ~54 MiB on v7x, ~108 MiB on v5e/v6e


def _choose_batch(b_pad, batch_tile=None):
    """Returns (padded_batch, batch_tile); tile is always a multiple of 16."""
    if batch_tile is not None:
        tb = int(batch_tile)
        assert tb % 16 == 0, "batch tile must be a multiple of 16 (bf16 sublane packing)"
        return _round_up(b_pad, tb), tb
    if b_pad >= 1024:
        for tb in (512, 256, 128, 64, 32):
            if b_pad % tb == 0:
                return b_pad, tb
        # Re-pad a few extra rows instead of collapsing to tiny tiles / 65+ grid steps.
        return _round_up(b_pad, 256), 256
    if b_pad >= 32:
        if b_pad % 32 != 0:
            b_pad = _round_up(b_pad, 32)
        return b_pad, b_pad // 2          # >= 2 grid steps -> both TCs on v7x
    return b_pad, b_pad                   # tiny batch: single step, zero loop overhead


def mlp_kernel(x_ref, w1_ref, b1_ref, w2_ref, b2_ref, w3_ref, b3_ref, o_ref):
    # Hoisted bias loads (single read each).
    b1 = b1_ref[...]
    b2 = b2_ref[...]
    b3 = b3_ref[...]

    x = x_ref[...]                                              # bf16 (tb, F)
    h1 = jnp.dot(x, w1_ref[...], preferred_element_type=jnp.float32) + b1
    h1 = jnp.maximum(h1, 0.0).astype(jnp.bfloat16)              # back to bf16 for the MXU
    h2 = jnp.dot(h1, w2_ref[...], preferred_element_type=jnp.float32) + b2
    h2 = jnp.maximum(h2, 0.0).astype(jnp.bfloat16)
    out = jnp.dot(h2, w3_ref[...], preferred_element_type=jnp.float32) + b3
    o_ref[...] = out.astype(o_ref.dtype)                        # bf16 output store


def pad_params(params):
    """One-time pad/cast of weights and biases (hoisted out of the per-call path).

    Weights are stored as (in_features, out_features) == transpose of PyTorch
    Linear.weight; biases as (out_features,) or (1, out_features).
    """
    n_feature, n_hidden1 = params["w1"].shape
    n_hidden2 = params["w2"].shape[1]
    n_output = params["w3"].shape[1]
    align = _mxu_lane_align()
    F = _pad_dim(n_feature, align)
    H1 = _pad_dim(n_hidden1, align)
    H2 = _pad_dim(n_hidden2, align)
    O = _pad_dim(n_output, align)

    def padw(w, r, c):
        w = jnp.asarray(w, jnp.bfloat16)
        return jnp.pad(w, ((0, r - w.shape[0]), (0, c - w.shape[1])))

    def padb(b, c):
        b = jnp.asarray(b, jnp.float32).reshape(1, -1)
        return jnp.pad(b, ((0, 0), (0, c - b.shape[1])))

    padded = {
        "w1": padw(params["w1"], F, H1), "b1": padb(params["b1"], H1),
        "w2": padw(params["w2"], H1, H2), "b2": padb(params["b2"], H2),
        "w3": padw(params["w3"], H2, O), "b3": padb(params["b3"], O),
    }
    dims = (int(n_feature), int(n_hidden1), int(n_hidden2), int(n_output))
    return padded, dims


@functools.partial(jax.jit, static_argnames=("dims", "batch_tile"))
def mlp_forward(x, padded, dims, batch_tile=None):
    """x: (B, n_feature) f32/bf16; padded: dict from pad_params(); dims: real sizes."""
    n_feature, n_hidden1, n_hidden2, n_output = dims
    w1, b1 = padded["w1"], padded["b1"]
    w2, b2 = padded["w2"], padded["b2"]
    w3, b3 = padded["w3"], padded["b3"]
    F, H1 = w1.shape
    H2 = w2.shape[1]
    O = w3.shape[1]

    B = x.shape[0]
    Bp, tb = _choose_batch(_round_up(B, 16), batch_tile)

    # Weights/biases are grid-invariant; single-buffer them when big enough to matter.
    weight_bytes = 2 * (w1.size + w2.size + w3.size)           # bf16
    bias_bytes = 4 * (b1.size + b2.size + b3.size)             # f32
    single_buffer_weights = (weight_bytes + bias_bytes) > (4 << 20)
    wb_factor = 1 if single_buffer_weights else 2

    def footprint(tb_):
        act = 2 * tb_ * (F + O) * 2                 # double-buffered bf16 x / out blocks
        inter = tb_ * (H1 + H2) * (4 + 2)           # f32 accum + bf16 recast intermediates
        return act + wb_factor * (weight_bytes + bias_bytes) + inter

    budget = _vmem_budget_bytes()
    # Shrink the batch tile if the fused step would not fit VMEM (halving keeps
    # Bp % tb == 0 and tb % 16 == 0).
    # TODO(synk): for very large hidden dims, tile H1/H2 with pltpu.emit_pipeline
    # instead of only shrinking tb.
    while footprint(tb) > budget and tb % 32 == 0 and tb > 16:
        tb //= 2
    vmem_limit = int(min(budget, max(2 * footprint(tb), 16 * 1024 * 1024)))

    # Pad/cast x only when needed; under jit this fuses with upstream producers.
    if x.dtype != jnp.bfloat16:
        x = x.astype(jnp.bfloat16)
    if x.shape != (Bp, F):
        x = jnp.pad(x, ((0, Bp - B), (0, F - n_feature)))

    grid = (Bp // tb,)

    if single_buffer_weights:
        rep = lambda shape: pl.BlockSpec(shape, lambda i: (0, 0),
                                         pipeline_mode=pl.Buffered(1))
    else:
        rep = lambda shape: pl.BlockSpec(shape, lambda i: (0, 0))

    cost = pl.CostEstimate(
        flops=2 * Bp * (F * H1 + H1 * H2 + H2 * O),
        transcendentals=0,
        bytes_accessed=int(Bp * (F + O) * 2 + weight_bytes + bias_bytes),
    )

    out_p = pl.pallas_call(
        mlp_kernel,
        out_shape=jax.ShapeDtypeStruct((Bp, O), jnp.bfloat16),   # bf16 output stream
        grid_spec=pltpu.PrefetchScalarGridSpec(
            num_scalar_prefetch=0,
            grid=grid,
            in_specs=[
                pl.BlockSpec((tb, F), lambda i: (i, 0)),
                rep((F, H1)),
                rep((1, H1)),
                rep((H1, H2)),
                rep((1, H2)),
                rep((H2, O)),
                rep((1, O)),
            ],
            out_specs=pl.BlockSpec((tb, O), lambda i: (i, 0)),
        ),
        compiler_params=pltpu.CompilerParams(
            # TODO(synk): verify on v7x that "parallel" actually shards the batch axis
            # across both TensorCores; switch to a leading CORE_PARALLEL axis if not.
            dimension_semantics=("parallel",),
            vmem_limit_bytes=vmem_limit,
        ),
        cost_estimate=cost,
    )(x, w1, b1, w2, b2, w3, b3)

    return out_p[:B, :n_output].astype(jnp.float32)


def init_params(key, n_feature, n_hidden1, n_hidden2, n_output):
    """Deterministic init mimicking PyTorch Linear default (uniform +/- 1/sqrt(fan_in))."""
    ks = jax.random.split(key, 6)

    def lin(kw, kb, fan_in, fan_out):
        bound = 1.0 / jnp.sqrt(jnp.float32(fan_in))
        w = jax.random.uniform(kw, (fan_in, fan_out), jnp.float32, -bound, bound)
        b = jax.random.uniform(kb, (1, fan_out), jnp.float32, -bound, bound)
        return w, b

    w1, b1 = lin(ks[0], ks[1], n_feature, n_hidden1)
    w2, b2 = lin(ks[2], ks[3], n_hidden1, n_hidden2)
    w3, b3 = lin(ks[4], ks[5], n_hidden2, n_output)
    return {"w1": w1, "b1": b1, "w2": w2, "b2": b2, "w3": w3, "b3": b3}


if __name__ == "__main__":
    key = jax.random.PRNGKey(0)
    k_x, k_p = jax.random.split(key)

    B, n_feature, n_hidden1, n_hidden2, n_output = 8, 32, 64, 64, 16
    x = jax.random.normal(k_x, (B, n_feature), jnp.float32)
    params = init_params(k_p, n_feature, n_hidden1, n_hidden2, n_output)

    padded, dims = pad_params(params)            # one-time pad/cast, not per-call
    out = mlp_forward(x, padded, dims)
    jax.block_until_ready(out)
    assert out.shape == (B, n_output) and out.dtype == jnp.float32

    # Reference mirroring the kernel numerics (bf16 MXU operands, f32 accumulation,
    # bf16 output store).
    def ref_bf16(x, p):
        h1 = jnp.dot(x.astype(jnp.bfloat16), p["w1"].astype(jnp.bfloat16),
                     preferred_element_type=jnp.float32) + p["b1"]
        h1 = jnp.maximum(h1, 0.0).astype(jnp.bfloat16)
        h2 = jnp.dot(h1, p["w2"].astype(jnp.bfloat16),
                     preferred_element_type=jnp.float32) + p["b2"]
        h2 = jnp.maximum(h2, 0.0).astype(jnp.bfloat16)
        o = jnp.dot(h2, p["w3"].astype(jnp.bfloat16),
                    preferred_element_type=jnp.float32) + p["b3"]
        return o.astype(jnp.bfloat16).astype(jnp.float32)

    ref = ref_bf16(x, params)
    assert jnp.allclose(out, ref, atol=2e-2, rtol=2e-2), float(jnp.max(jnp.abs(out - ref)))

    # Loose sanity check against the full-f32 PyTorch-equivalent math (bf16 deviation
    # from torch f32 numerics is intentional and documented).
    h1 = jnp.maximum(x @ params["w1"] + params["b1"], 0.0)
    h2 = jnp.maximum(h1 @ params["w2"] + params["b2"], 0.0)
    ref_f32 = h2 @ params["w3"] + params["b3"]
    assert jnp.allclose(out, ref_f32, atol=6e-2, rtol=6e-2)

    print("KERNEL_OK")
</pallas_src>

<mosaic_0001>
module attributes {stable_mosaic.version = 11 : i64} {
  func.func @mlp_kernel(%arg0: i32, %arg1: memref<16x128xbf16, #tpu.memory_space<vmem>>, %arg2: memref<128x128xbf16, #tpu.memory_space<vmem>>, %arg3: memref<1x128xf32, #tpu.memory_space<vmem>>, %arg4: memref<128x128xbf16, #tpu.memory_space<vmem>>, %arg5: memref<1x128xf32, #tpu.memory_space<vmem>>, %arg6: memref<128x128xbf16, #tpu.memory_space<vmem>>, %arg7: memref<1x128xf32, #tpu.memory_space<vmem>>, %arg8: memref<16x128xbf16, #tpu.memory_space<vmem>>) attributes {dimension_semantics = [#tpu.dimension_semantics<parallel>], iteration_bounds = array<i64: 1>, scalar_prefetch = 0 : i64, scratch_operands = 0 : i64, tpu.core_type = #tpu.core_type<tc>, window_params = [{transform_indices = @transform_0, window_bounds = array<i64: 16, 128>}, {pipeline_mode = #tpu.pipeline_mode<synchronous>, transform_indices = @transform_1, window_bounds = array<i64: 128, 128>}, {pipeline_mode = #tpu.pipeline_mode<synchronous>, transform_indices = @transform_2, window_bounds = array<i64: 1, 128>}, {pipeline_mode = #tpu.pipeline_mode<synchronous>, transform_indices = @transform_3, window_bounds = array<i64: 128, 128>}, {pipeline_mode = #tpu.pipeline_mode<synchronous>, transform_indices = @transform_4, window_bounds = array<i64: 1, 128>}, {pipeline_mode = #tpu.pipeline_mode<synchronous>, transform_indices = @transform_5, window_bounds = array<i64: 128, 128>}, {pipeline_mode = #tpu.pipeline_mode<synchronous>, transform_indices = @transform_6, window_bounds = array<i64: 1, 128>}, {transform_indices = @transform_7, window_bounds = array<i64: 16, 128>}]} {
    %c0 = arith.constant 0 : index
    %c0_0 = arith.constant 0 : index
    %0 = vector.load %arg3[%c0, %c0_0] : memref<1x128xf32, #tpu.memory_space<vmem>>, vector<1x128xf32>
    %c0_1 = arith.constant 0 : index
    %c0_2 = arith.constant 0 : index
    %1 = vector.load %arg5[%c0_1, %c0_2] : memref<1x128xf32, #tpu.memory_space<vmem>>, vector<1x128xf32>
    %c0_3 = arith.constant 0 : index
    %c0_4 = arith.constant 0 : index
    %2 = vector.load %arg7[%c0_3, %c0_4] : memref<1x128xf32, #tpu.memory_space<vmem>>, vector<1x128xf32>
    %c0_5 = arith.constant 0 : index
    %c0_6 = arith.constant 0 : index
    %3 = vector.load %arg1[%c0_5, %c0_6] : memref<16x128xbf16, #tpu.memory_space<vmem>>, vector<16x128xbf16>
    %c0_7 = arith.constant 0 : index
    %c0_8 = arith.constant 0 : index
    %4 = vector.load %arg2[%c0_7, %c0_8] : memref<128x128xbf16, #tpu.memory_space<vmem>>, vector<128x128xbf16>
    %cst = arith.constant dense<0.000000e+00> : vector<16x128xf32>
    %5 = tpu.matmul %3, %4, %cst {dimension_numbers = #tpu.dot_dimension_numbers<[1], [0], [0], [1], [0, 0, 1, 1], [], []>} : vector<16x128xbf16>, vector<128x128xbf16>, vector<16x128xf32> -> vector<16x128xf32>
    %6 = vector.broadcast %0 : vector<1x128xf32> to vector<16x128xf32>
    %7 = arith.addf %5, %6 : vector<16x128xf32>
    %cst_9 = arith.constant 0.000000e+00 : f32
    %8 = vector.broadcast %cst_9 : f32 to vector<16x128xf32>
    %9 = arith.maximumf %7, %8 : vector<16x128xf32>
    %10 = arith.truncf %9 : vector<16x128xf32> to vector<16x128xbf16>
    %c0_10 = arith.constant 0 : index
    %c0_11 = arith.constant 0 : index
    %11 = vector.load %arg4[%c0_10, %c0_11] : memref<128x128xbf16, #tpu.memory_space<vmem>>, vector<128x128xbf16>
    %cst_12 = arith.constant dense<0.000000e+00> : vector<16x128xf32>
    %12 = tpu.matmul %10, %11, %cst_12 {dimension_numbers = #tpu.dot_dimension_numbers<[1], [0], [0], [1], [0, 0, 1, 1], [], []>} : vector<16x128xbf16>, vector<128x128xbf16>, vector<16x128xf32> -> vector<16x128xf32>
    %13 = vector.broadcast %1 : vector<1x128xf32> to vector<16x128xf32>
    %14 = arith.addf %12, %13 : vector<16x128xf32>
    %cst_13 = arith.constant 0.000000e+00 : f32
    %15 = vector.broadcast %cst_13 : f32 to vector<16x128xf32>
    %16 = arith.maximumf %14, %15 : vector<16x128xf32>
    %17 = arith.truncf %16 : vector<16x128xf32> to vector<16x128xbf16>
    %c0_14 = arith.constant 0 : index
    %c0_15 = arith.constant 0 : index
    %18 = vector.load %arg6[%c0_14, %c0_15] : memref<128x128xbf16, #tpu.memory_space<vmem>>, vector<128x128xbf16>
    %cst_16 = arith.constant dense<0.000000e+00> : vector<16x128xf32>
    %19 = tpu.matmul %17, %18, %cst_16 {dimension_numbers = #tpu.dot_dimension_numbers<[1], [0], [0], [1], [0, 0, 1, 1], [], []>} : vector<16x128xbf16>, vector<128x128xbf16>, vector<16x128xf32> -> vector<16x128xf32>
    %20 = vector.broadcast %2 : vector<1x128xf32> to vector<16x128xf32>
    %21 = arith.addf %19, %20 : vector<16x128xf32>
    %22 = arith.truncf %21 : vector<16x128xf32> to vector<16x128xbf16>
    %c0_17 = arith.constant 0 : index
    %c0_18 = arith.constant 0 : index
    %23 = vector.load %arg8[%c0_17, %c0_18] : memref<16x128xbf16, #tpu.memory_space<vmem>>, vector<16x128xbf16>
    tpu.vector_store %arg8[%c0_17, %c0_18], %22 {strides = array<i32>} : memref<16x128xbf16, #tpu.memory_space<vmem>>, vector<16x128xbf16>,
    return
  }
  func.func @transform_0(%arg0: i32) -> (i32, i32) {
    %c0_i32 = arith.constant 0 : i32
    %c0_i32_0 = arith.constant 0 : i32
    return %arg0, %c0_i32 : i32, i32
  }
  func.func @transform_1(%arg0: i32) -> (i32, i32) {
    %c0_i32 = arith.constant 0 : i32
    %c0_i32_0 = arith.constant 0 : i32
    %c0_i32_1 = arith.constant 0 : i32
    return %c0_i32, %c0_i32_0 : i32, i32
  }
  func.func @transform_2(%arg0: i32) -> (i32, i32) {
    %c0_i32 = arith.constant 0 : i32
    %c0_i32_0 = arith.constant 0 : i32
    %c0_i32_1 = arith.constant 0 : i32
    return %c0_i32, %c0_i32_0 : i32, i32
  }
  func.func @transform_3(%arg0: i32) -> (i32, i32) {
    %c0_i32 = arith.constant 0 : i32
    %c0_i32_0 = arith.constant 0 : i32
    %c0_i32_1 = arith.constant 0 : i32
    return %c0_i32, %c0_i32_0 : i32, i32
  }
  func.func @transform_4(%arg0: i32) -> (i32, i32) {
    %c0_i32 = arith.constant 0 : i32
    %c0_i32_0 = arith.constant 0 : i32
    %c0_i32_1 = arith.constant 0 : i32
    return %c0_i32, %c0_i32_0 : i32, i32
  }
  func.func @transform_5(%arg0: i32) -> (i32, i32) {
    %c0_i32 = arith.constant 0 : i32
    %c0_i32_0 = arith.constant 0 : i32
    %c0_i32_1 = arith.constant 0 : i32
    return %c0_i32, %c0_i32_0 : i32, i32
  }
  func.func @transform_6(%arg0: i32) -> (i32, i32) {
    %c0_i32 = arith.constant 0 : i32
    %c0_i32_0 = arith.constant 0 : i32
    %c0_i32_1 = arith.constant 0 : i32
    return %c0_i32, %c0_i32_0 : i32, i32
  }
  func.func @transform_7(%arg0: i32) -> (i32, i32) {
    %c0_i32 = arith.constant 0 : i32
    %c0_i32_0 = arith.constant 0 : i32
    return %arg0, %c0_i32 : i32, i32
  }
}

</mosaic_0001>

<llo_original>
// kernel: mlp_forward.1
$region0: #{mlp_forward.1}
  #allocation0 [shape = 'u32[]', space=smem, size = 0x4, offset = 0x4, fixed_abs, tag = 'smem constant byte address 0x4 - core index']
  #allocation1 [shape = 'u32[72,128]{1,0:T(1,128)}', space=vmem, size = 0x9000, scoped, tag = 'internal scratch']
  %s0 = inlined_call_operand.vmem [shape: bf16[16,128], index: 0, kind: input, shape index: {}]
  %s1 = inlined_call_operand.hbm [shape: bf16[128,128], index: 1, kind: input, shape index: {}]
  %s2 = inlined_call_operand.vmem [shape: f32[1,128], index: 2, kind: input, shape index: {}]
  %s3 = inlined_call_operand.hbm [shape: bf16[128,128], index: 3, kind: input, shape index: {}]
  %s4 = inlined_call_operand.vmem [shape: f32[1,128], index: 4, kind: input, shape index: {}]
  %s5 = inlined_call_operand.hbm [shape: bf16[128,128], index: 5, kind: input, shape index: {}]
  %s6 = inlined_call_operand.vmem [shape: f32[1,128], index: 6, kind: input, shape index: {}]
  %s7 = inlined_call_operand.vmem [shape: bf16[16,128], index: 7, kind: output, shape index: {}]
  %s8 = sld [smem:[#allocation0]]
  $region50: #{mlp_forward.1} parent=0
    _
  %s10 = ssub.s32 1, %s8
  %s11 = scalar_select 0, %s10, %s8
  $region1: #{mlp_forward.1} parent=0
    #allocation2 [shape = 'u8[32768]{0}', space=vmem, size = 0x8000, scoped, tag = 'input window, operand 1, single buffered']
    #allocation3 [shape = 's32[1]{0}', space=sflag, size = 0x4, scoped, tag = 'scoped memory for mlp_forward.1']
    #allocation4 [shape = 'u8[32768]{0}', space=vmem, size = 0x8000, scoped, tag = 'input window, operand 3, single buffered']
    #allocation5 [shape = 's32[1]{0}', space=sflag, size = 0x4, scoped, tag = 'scoped memory for mlp_forward.1']
    #allocation6 [shape = 'u8[32768]{0}', space=vmem, size = 0x8000, scoped, tag = 'input window, operand 5, single buffered']
    %12 = vsyncpa [#allocation3], 0
    %13 = vsyncpa [#allocation5], 0
    // Predicated region
    $region2: #{mlp_forward.1} parent=1 // pred_check
      _
    $region3: #{mlp_forward.1} parent=1 // pred_check_branch
      %15 = sbr.rel (0) target = $region5
    $region4: #{mlp_forward.1} parent=1 // pred_region
      _
    $region5: #{mlp_forward.1} parent=1 // pred_fallthru
      _
    // Predicated region
    $region6: #{mlp_forward.1} parent=1 // pred_check
      _
    $region7: #{mlp_forward.1} parent=1 // pred_check_branch
      %17 = sbr.rel (0) target = $region9
    $region8: #{mlp_forward.1} parent=1 // pred_region
      %19 = vsyncadd [#allocation3], 0
      %s20 = sshll.u32 %s1, 4
      %s21 = int_to_ptr.hbm [resolvable:$true] %s20
      %s22 = sshll.u32 [#allocation2], 4
      %s23 = int_to_ptr.vmem [resolvable:$true] %s22
      %28 = dma.hbm_to_vmem [thread:$0]  %s21, 1024, %s23, [#allocation3], 64, 64, 4
    $region9: #{mlp_forward.1} parent=1 // pred_fallthru
      _
    // Predicated region
    $region10: #{mlp_forward.1} parent=1 // pred_check
      _
    $region11: #{mlp_forward.1} parent=1 // pred_check_branch
      %30 = sbr.rel (0) target = $region13
    $region12: #{mlp_forward.1} parent=1 // pred_region
      _
    $region13: #{mlp_forward.1} parent=1 // pred_fallthru
      _
    // Predicated region
    $region14: #{mlp_forward.1} parent=1 // pred_check
      _
    $region15: #{mlp_forward.1} parent=1 // pred_check_branch
      %32 = sbr.rel (0) target = $region17
    $region16: #{mlp_forward.1} parent=1 // pred_region
      %34 = vsyncadd [#allocation5], 0
      %s35 = sshll.u32 %s3, 4
      %s36 = int_to_ptr.hbm [resolvable:$true] %s35
      %s37 = sshll.u32 [#allocation4], 4
      %s38 = int_to_ptr.vmem [resolvable:$true] %s37
      %43 = dma.hbm_to_vmem [thread:$0]  %s36, 1024, %s38, [#allocation5], 64, 64, 4
    $region17: #{mlp_forward.1} parent=1 // pred_fallthru
      _
    // Predicated region
    $region18: #{mlp_forward.1} parent=1 // pred_check
      _
    $region19: #{mlp_forward.1} parent=1 // pred_check_branch
      %45 = sbr.rel (0) target = $region21
    $region20: #{mlp_forward.1} parent=1 // pred_region
      _
    $region21: #{mlp_forward.1} parent=1 // pred_fallthru
      _
    // Predicated region
    $region22: #{mlp_forward.1} parent=1 // pred_check
      _
    $region23: #{mlp_forward.1} parent=1 // pred_check_branch
      %47 = sbr.rel (0) target = $region25
    $region24: #{mlp_forward.1} parent=1 // pred_region
      %49 = vsyncadd [#allocation5], 0
      %s50 = sshll.u32 %s5, 4
      %s51 = int_to_ptr.hbm [resolvable:$true] %s50
      %s52 = sshll.u32 [#allocation6], 4
      %s53 = int_to_ptr.vmem [resolvable:$true] %s52
      %58 = dma.hbm_to_vmem [thread:$0]  %s51, 1024, %s53, [#allocation5], 64, 64, 4
    $region25: #{mlp_forward.1} parent=1 // pred_fallthru
      _
    // Predicated region
    $region26: #{mlp_forward.1} parent=1 // pred_check
      _
    $region27: #{mlp_forward.1} parent=1 // pred_check_branch
      %60 = sbr.rel (0) target = $region29
    $region28: #{mlp_forward.1} parent=1 // pred_region
      _
    $region29: #{mlp_forward.1} parent=1 // pred_fallthru
      _
    // Predicated region
    $region30: #{mlp_forward.1} parent=1 // pred_check
      _
    $region31: #{mlp_forward.1} parent=1 // pred_check_branch
      %62 = sbr.rel (0) target = $region33
    $region32: #{mlp_forward.1} parent=1 // pred_region
      %64 = dma.done [#allocation3], 1024
    $region33: #{mlp_forward.1} parent=1 // pred_fallthru
      _
    // Predicated region
    $region34: #{mlp_forward.1} parent=1 // pred_check
      _
    $region35: #{mlp_forward.1} parent=1 // pred_check_branch
      %66 = sbr.rel (0) target = $region37
    $region36: #{mlp_forward.1} parent=1 // pred_region
      %68 = dma.done [#allocation5], 1024
    $region37: #{mlp_forward.1} parent=1 // pred_fallthru
      _
    // Predicated region
    $region38: #{mlp_forward.1} parent=1 // pred_check
      _
    $region39: #{mlp_forward.1} parent=1 // pred_check_branch
      %70 = sbr.rel (0) target = $region41
    $region40: #{mlp_forward.1} parent=1 // pred_region
      %72 = dma.done [#allocation5], 1024
    $region41: #{mlp_forward.1} parent=1 // pred_fallthru
      _
    %v73 = vld [vmem:[%s2] sm:$0x1]
    %v74 = vld [vmem:[%s4] sm:$0x1]
    %v75 = vld [vmem:[%s6] sm:$0x1]
    %v76 = vld [vmem:[%s0] sm:$0xf]
    %v77 = vld [vmem:[%s0 + $0x4] sm:$0xf]
    %v78 = vld [vmem:[#allocation2] sm:$0xf]
    %v79 = vld [vmem:[#allocation2 + $0x4] sm:$0xf]
    %v80 = vld [vmem:[#allocation2 + $0x8] sm:$0xf]
    %v81 = vld [vmem:[#allocation2 + $0xc] sm:$0xf]
    %v82 = vld [vmem:[#allocation2 + $0x10] sm:$0xf]
    %v83 = vld [vmem:[#allocation2 + $0x14] sm:$0xf]
    %v84 = vld [vmem:[#allocation2 + $0x18] sm:$0xf]
    %v85 = vld [vmem:[#allocation2 + $0x1c] sm:$0xf]
    %v86 = vld [vmem:[#allocation2 + $0x20] sm:$0xf]
    %v87 = vld [vmem:[#allocation2 + $0x24] sm:$0xf]
    %v88 = vld [vmem:[#allocation2 + $0x28] sm:$0xf]
    %v89 = vld [vmem:[#allocation2 + $0x2c] sm:$0xf]
    %v90 = vld [vmem:[#allocation2 + $0x30] sm:$0xf]
    %v91 = vld [vmem:[#allocation2 + $0x34] sm:$0xf]
    %v92 = vld [vmem:[#allocation2 + $0x38] sm:$0xf]
    %v93 = vld [vmem:[#allocation2 + $0x3c] sm:$0xf]
    %v95 = vperm.slane %v73, 0
    %v99 = vunpack.c.l.b16 %v76
    %v100 = vunpack.c.l.b16 %v77
    %v101 = vpack.c.b16 %v100, %v99
    %v119 = vunpack.c.l.b16 %v78
    %v120 = vunpack.c.l.b16 %v79
    %v121 = vunpack.c.l.b16 %v80
    %v122 = vunpack.c.l.b16 %v81
    %v123 = vunpack.c.l.b16 %v82
    %v124 = vunpack.c.l.b16 %v83
    %v125 = vunpack.c.l.b16 %v84
    %v126 = vunpack.c.l.b16 %v85
    %v127 = vunpack.c.l.b16 %v86
    %v128 = vunpack.c.l.b16 %v87
    %v129 = vunpack.c.l.b16 %v88
    %v130 = vunpack.c.l.b16 %v89
    %v131 = vunpack.c.l.b16 %v90
    %v132 = vunpack.c.l.b16 %v91
    %v133 = vunpack.c.l.b16 %v92
    %v134 = vunpack.c.l.b16 %v93
    %v135 = vpack.c.b16 %v120, %v119
    %v136 = vpack.c.b16 %v122, %v121
    %v137 = vpack.c.b16 %v124, %v123
    %v138 = vpack.c.b16 %v126, %v125
    %v139 = vpack.c.b16 %v128, %v127
    %v140 = vpack.c.b16 %v130, %v129
    %v141 = vpack.c.b16 %v132, %v131
    %v142 = vpack.c.b16 %v134, %v133
    %151 = vmatpush.bf16.msra.mxu0 %v142
    %152 = vmatpush.bf16.msra.mxu0 %v141
    %153 = vmatpush.bf16.msra.mxu0 %v140
    %154 = vmatpush.bf16.msra.mxu0 %v139
    %155 = vmatpush.bf16.msra.mxu0 %v138
    %156 = vmatpush.bf16.msra.mxu0 %v137
    %157 = vmatpush.bf16.msra.mxu0 %v136
    %158 = vmatpush.bf16.msra.mxu0 %v135
    %159 = vmatmul.bf16.gmra.mxu0 %v101
    %v160 = vpop.f32.mrf.mxu0
    %v161 = vadd.f32 %v95, %v160
    %v162 = vpop.f32.mrf.mxu0
    %v163 = vadd.f32 %v95, %v162
    %164 = vdwg.mxu0
    %v165 = vmax.f32 %v161, 0.0
    %v166 = vmax.f32 %v163, 0.0
    %v167 = vpack.c.bf16 %v166, %v165
    %v168 = vld [vmem:[#allocation4] sm:$0xf]
    %v169 = vld [vmem:[#allocation4 + $0x4] sm:$0xf]
    %v170 = vld [vmem:[#allocation4 + $0x8] sm:$0xf]
    %v171 = vld [vmem:[#allocation4 + $0xc] sm:$0xf]
    %v172 = vld [vmem:[#allocation4 + $0x10] sm:$0xf]
    %v173 = vld [vmem:[#allocation4 + $0x14] sm:$0xf]
    %v174 = vld [vmem:[#allocation4 + $0x18] sm:$0xf]
    %v175 = vld [vmem:[#allocation4 + $0x1c] sm:$0xf]
    %v176 = vld [vmem:[#allocation4 + $0x20] sm:$0xf]
    %v177 = vld [vmem:[#allocation4 + $0x24] sm:$0xf]
    %v178 = vld [vmem:[#allocation4 + $0x28] sm:$0xf]
    %v179 = vld [vmem:[#allocation4 + $0x2c] sm:$0xf]
    %v180 = vld [vmem:[#allocation4 + $0x30] sm:$0xf]
    %v181 = vld [vmem:[#allocation4 + $0x34] sm:$0xf]
    %v182 = vld [vmem:[#allocation4 + $0x38] sm:$0xf]
    %v183 = vld [vmem:[#allocation4 + $0x3c] sm:$0xf]
    %v185 = vperm.slane %v74, 0
    %v203 = vunpack.c.l.b16 %v168
    %v204 = vunpack.c.l.b16 %v169
    %v205 = vunpack.c.l.b16 %v170
    %v206 = vunpack.c.l.b16 %v171
    %v207 = vunpack.c.l.b16 %v172
    %v208 = vunpack.c.l.b16 %v173
    %v209 = vunpack.c.l.b16 %v174
    %v210 = vunpack.c.l.b16 %v175
    %v211 = vunpack.c.l.b16 %v176
    %v212 = vunpack.c.l.b16 %v177
    %v213 = vunpack.c.l.b16 %v178
    %v214 = vunpack.c.l.b16 %v179
    %v215 = vunpack.c.l.b16 %v180
    %v216 = vunpack.c.l.b16 %v181
    %v217 = vunpack.c.l.b16 %v182
    %v218 = vunpack.c.l.b16 %v183
    %v219 = vpack.c.b16 %v204, %v203
    %v220 = vpack.c.b16 %v206, %v205
    %v221 = vpack.c.b16 %v208, %v207
    %v222 = vpack.c.b16 %v210, %v209
    %v223 = vpack.c.b16 %v212, %v211
    %v224 = vpack.c.b16 %v214, %v213
    %v225 = vpack.c.b16 %v216, %v215
    %v226 = vpack.c.b16 %v218, %v217
    %235 = vmatpush.bf16.msra.mxu0 %v226
    %236 = vmatpush.bf16.msra.mxu0 %v225
    %237 = vmatpush.bf16.msra.mxu0 %v224
    %238 = vmatpush.bf16.msra.mxu0 %v223
    %239 = vmatpush.bf16.msra.mxu0 %v222
    %240 = vmatpush.bf16.msra.mxu0 %v221
    %241 = vmatpush.bf16.msra.mxu0 %v220
    %242 = vmatpush.bf16.msra.mxu0 %v219
    %243 = vmatmul.bf16.gmra.mxu0 %v167
    %v244 = vpop.f32.mrf.mxu0
    %v245 = vadd.f32 %v185, %v244
    %v246 = vpop.f32.mrf.mxu0
    %v247 = vadd.f32 %v185, %v246
    %248 = vdwg.mxu0
    %v249 = vmax.f32 %v245, 0.0
    %v250 = vmax.f32 %v247, 0.0
    %v251 = vpack.c.bf16 %v250, %v249
    %v252 = vld [vmem:[#allocation6] sm:$0xf]
    %v253 = vld [vmem:[#allocation6 + $0x4] sm:$0xf]
    %v254 = vld [vmem:[#allocation6 + $0x8] sm:$0xf]
    %v255 = vld [vmem:[#allocation6 + $0xc] sm:$0xf]
    %v256 = vld [vmem:[#allocation6 + $0x10] sm:$0xf]
    %v257 = vld [vmem:[#allocation6 + $0x14] sm:$0xf]
    %v258 = vld [vmem:[#allocation6 + $0x18] sm:$0xf]
    %v259 = vld [vmem:[#allocation6 + $0x1c] sm:$0xf]
    %v260 = vld [vmem:[#allocation6 + $0x20] sm:$0xf]
    %v261 = vld [vmem:[#allocation6 + $0x24] sm:$0xf]
    %v262 = vld [vmem:[#allocation6 + $0x28] sm:$0xf]
    %v263 = vld [vmem:[#allocation6 + $0x2c] sm:$0xf]
    %v264 = vld [vmem:[#allocation6 + $0x30] sm:$0xf]
    %v265 = vld [vmem:[#allocation6 + $0x34] sm:$0xf]
    %v266 = vld [vmem:[#allocation6 + $0x38] sm:$0xf]
    %v267 = vld [vmem:[#allocation6 + $0x3c] sm:$0xf]
    %v269 = vperm.slane %v75, 0
    %v287 = vunpack.c.l.b16 %v252
    %v288 = vunpack.c.l.b16 %v253
    %v289 = vunpack.c.l.b16 %v254
    %v290 = vunpack.c.l.b16 %v255
    %v291 = vunpack.c.l.b16 %v256
    %v292 = vunpack.c.l.b16 %v257
    %v293 = vunpack.c.l.b16 %v258
    %v294 = vunpack.c.l.b16 %v259
    %v295 = vunpack.c.l.b16 %v260
    %v296 = vunpack.c.l.b16 %v261
    %v297 = vunpack.c.l.b16 %v262
    %v298 = vunpack.c.l.b16 %v263
    %v299 = vunpack.c.l.b16 %v264
    %v300 = vunpack.c.l.b16 %v265
    %v301 = vunpack.c.l.b16 %v266
    %v302 = vunpack.c.l.b16 %v267
    %v303 = vpack.c.b16 %v288, %v287
    %v304 = vpack.c.b16 %v290, %v289
    %v305 = vpack.c.b16 %v292, %v291
    %v306 = vpack.c.b16 %v294, %v293
    %v307 = vpack.c.b16 %v296, %v295
    %v308 = vpack.c.b16 %v298, %v297
    %v309 = vpack.c.b16 %v300, %v299
    %v310 = vpack.c.b16 %v302, %v301
    %319 = vmatpush.bf16.msra.mxu0 %v310
    %320 = vmatpush.bf16.msra.mxu0 %v309
    %321 = vmatpush.bf16.msra.mxu0 %v308
    %322 = vmatpush.bf16.msra.mxu0 %v307
    %323 = vmatpush.bf16.msra.mxu0 %v306
    %324 = vmatpush.bf16.msra.mxu0 %v305
    %325 = vmatpush.bf16.msra.mxu0 %v304
    %326 = vmatpush.bf16.msra.mxu0 %v303
    %327 = vmatmul.bf16.gmra.mxu0 %v251
    %v328 = vpop.f32.mrf.mxu0
    %v329 = vadd.f32 %v269, %v328
    %v330 = vpop.f32.mrf.mxu0
    %v331 = vadd.f32 %v269, %v330
    %332 = vdwg.mxu0
    %v333 = vpack.c.bf16 %v329, %v329
    %v334 = vpack.c.bf16 %v331, %v331
    %335 = vst [vmem:[%s7] sm:$0xf] %v333
    %336 = vst [vmem:[%s7 + $0x4] sm:$0xf] %v334
    // Predicated region
    $region42: #{mlp_forward.1} parent=1 // pred_check
      _
    $region43: #{mlp_forward.1} parent=1 // pred_check_branch
      %338 = sbr.rel (0) target = $region45
    $region44: #{mlp_forward.1} parent=1 // pred_region
      _
    $region45: #{mlp_forward.1} parent=1 // pred_fallthru
      _
    // Predicated region
    $region46: #{mlp_forward.1} parent=1 // pred_check
      _
    $region47: #{mlp_forward.1} parent=1 // pred_check_branch
      %340 = sbr.rel (0) target = $region49
    $region48: #{mlp_forward.1} parent=1 // pred_region
      _
    $region49: #{mlp_forward.1} parent=1 // pred_fallthru
      _
    %341 = vsyncpa [#allocation3], 1
    %342 = vsyncpa [#allocation5], 1

</llo_original>
